<compile_context>
chip_gen: v5e
topology: v5e:2x2
jax: 0.10.0
libtpu: 0.0.40
codegen_flags: <defaults>
</compile_context>

<pallas_src>
import functools
import math

import jax
import jax.numpy as jnp
from jax import lax
from jax.experimental import pallas as pl
from jax.experimental.pallas import tpu as pltpu

LANES = 128
MAX_TILE_R = 2048   # (2048, 128) f32 == 1 MiB per input block
NUM_SPLITS = 2      # "parallel" leading axis -> both TCs on v7x


def _partial_sums_kernel(pred_ref, tgt_ref, abs_out, sq_out, *,
                         tile_r, rows_total, steps_per_split, total_steps,
                         need_row_mask, need_step_gate):
    c = pl.program_id(0)   # split ("parallel") axis
    j = pl.program_id(1)   # reduction ("arbitrary") axis

    @pl.when(j == 0)
    def _():
        abs_out[...] = jnp.zeros_like(abs_out)
        sq_out[...] = jnp.zeros_like(sq_out)

    step = c * steps_per_split + j

    def accumulate():
        d = pred_ref[...].astype(jnp.float32) - tgt_ref[...].astype(jnp.float32)
        if need_row_mask:
            row_ids = step * tile_r + lax.broadcasted_iota(
                jnp.int32, (tile_r, LANES), 0)
            d = jnp.where(row_ids < rows_total, d, 0.0)
        if tile_r % 8 == 0:
            # Fold the big tile onto the (8, 128) accumulators: pure VPU adds
            # across vregs, no cross-lane reduction in the hot loop.
            d3 = d.reshape(tile_r // 8, 8, LANES)
            abs_out[...] += jnp.sum(jnp.abs(d3), axis=0)
            sq_out[...] += jnp.sum(d3 * d3, axis=0)
        else:
            # Tiny full-array block whose row count is not a multiple of 8.
            abs_out[0:1, :] += jnp.sum(jnp.abs(d), axis=0, keepdims=True)
            sq_out[0:1, :] += jnp.sum(d * d, axis=0, keepdims=True)

    if need_step_gate:
        @pl.when(step < total_steps)
        def _():
            accumulate()
    else:
        accumulate()


def dynamic_weighted_loss(pred, target, alpha):
    """alpha * mean(|pred - target|) + (1 - alpha) * mean((pred - target)^2)."""
    assert pred.shape == target.shape
    n_elems = int(pred.size)

    p = pred.reshape(-1)
    t = target.reshape(-1)

    # Lane-dense view.  Contiguous reshape is free; the pad branch only runs
    # when n_elems is not a multiple of 128.
    rem = n_elems % LANES
    if rem:
        p = jnp.pad(p, (0, LANES - rem))
        t = jnp.pad(t, (0, LANES - rem))
    rows = p.size // LANES
    p2 = p.reshape(rows, LANES)
    t2 = t.reshape(rows, LANES)

    if rows > MAX_TILE_R:
        tile_r = MAX_TILE_R               # multiple of 8/16/32 -> any dtype OK
    else:
        tile_r = rows                     # single block == full array dims

    total_steps = pl.cdiv(rows, tile_r)
    num_splits = min(NUM_SPLITS, total_steps)
    steps_per_split = pl.cdiv(total_steps, num_splits)

    need_row_mask = (rows % tile_r) != 0
    need_step_gate = (num_splits * steps_per_split) != total_steps

    def in_map(c, j):
        step = c * steps_per_split + j
        if need_step_gate:
            # Phantom trailing steps on the last split just re-read a valid
            # block; their accumulation is skipped inside the kernel.
            step = jnp.minimum(step, total_steps - 1)
        return (step, 0)

    out_map = lambda c, j: (c, 0, 0)

    kernel = functools.partial(
        _partial_sums_kernel,
        tile_r=tile_r, rows_total=rows,
        steps_per_split=steps_per_split, total_steps=total_steps,
        need_row_mask=need_row_mask, need_step_gate=need_step_gate)

    abs_ps, sq_ps = pl.pallas_call(
        kernel,
        out_shape=(
            jax.ShapeDtypeStruct((num_splits, 8, LANES), jnp.float32),
            jax.ShapeDtypeStruct((num_splits, 8, LANES), jnp.float32),
        ),
        grid_spec=pltpu.PrefetchScalarGridSpec(
            num_scalar_prefetch=0,
            grid=(num_splits, steps_per_split),
            in_specs=[
                pl.BlockSpec((tile_r, LANES), in_map),
                pl.BlockSpec((tile_r, LANES), in_map),
            ],
            out_specs=[
                pl.BlockSpec((None, 8, LANES), out_map),
                pl.BlockSpec((None, 8, LANES), out_map),
            ],
        ),
        compiler_params=pltpu.CompilerParams(
            dimension_semantics=("parallel", "arbitrary")),
    )(p2, t2)

    # Final cross-lane reduce, mean, and alpha blend: 3 scalar flops, done here.
    inv_n = 1.0 / jnp.float32(n_elems)
    mae = jnp.sum(abs_ps) * inv_n
    mse = jnp.sum(sq_ps) * inv_n
    a = jnp.float32(alpha)
    return a * mae + (1.0 - a) * mse


def update_alpha(epoch, initial_alpha=0.1, max_alpha=0.8, epochs=100,
                 schedule='linear'):
    """Host-side mirror of DynamicWeightedLoss.update_alpha (scalar glue)."""
    if schedule == 'linear':
        a = initial_alpha + (max_alpha - initial_alpha) * (epoch / epochs)
    elif schedule == 'exp':
        a = initial_alpha + (max_alpha - initial_alpha) * (
            1 - math.exp(-5 * epoch / epochs))
    elif schedule == 'step':
        milestone = epochs // 3
        if epoch < milestone:
            a = initial_alpha
        elif epoch < 2 * milestone:
            a = (initial_alpha + max_alpha) / 2
        else:
            a = max_alpha
    else:
        raise ValueError(schedule)
    return max(initial_alpha, min(max_alpha, a))


def _reference_loss(pred, target, alpha):
    d = pred.astype(jnp.float32) - target.astype(jnp.float32)
    return alpha * jnp.mean(jnp.abs(d)) + (1.0 - alpha) * jnp.mean(d * d)


if __name__ == "__main__":
    key = jax.random.PRNGKey(0)
    k1, k2, k3, k4 = jax.random.split(key, 4)

    # Small NCHW inputs, as the PyTorch module would receive from a conv net.
    pred = jax.random.normal(k1, (2, 4, 16, 16), dtype=jnp.float32)
    target = jax.random.normal(k2, (2, 4, 16, 16), dtype=jnp.float32)

    # Deterministic "parameter": alpha at epoch 10 of the linear schedule.
    alpha = update_alpha(epoch=10, initial_alpha=0.1, max_alpha=0.8,
                         epochs=100, schedule='linear')

    loss = dynamic_weighted_loss(pred, target, alpha)
    jax.block_until_ready(loss)
    ref = _reference_loss(pred, target, alpha)
    assert jnp.allclose(loss, ref, rtol=1e-5, atol=1e-6), (loss, ref)

    # Secondary check: exercises the multi-block path (two "parallel" splits,
    # ragged last block handled by the in-kernel row mask).
    pred2 = jax.random.normal(k3, (2, 8, 144, 144), dtype=jnp.float32)
    target2 = jax.random.normal(k4, (2, 8, 144, 144), dtype=jnp.float32)
    loss2 = dynamic_weighted_loss(pred2, target2, alpha)
    jax.block_until_ready(loss2)
    ref2 = _reference_loss(pred2, target2, alpha)
    assert jnp.allclose(loss2, ref2, rtol=1e-4, atol=1e-5), (loss2, ref2)

    print("KERNEL_OK")
</pallas_src>

<mosaic_0001>
module attributes {stable_mosaic.version = 11 : i64} {
  func.func @_partial_sums_kernel(%arg0: i32, %arg1: i32, %arg2: memref<16x128xf32, #tpu.memory_space<vmem>>, %arg3: memref<16x128xf32, #tpu.memory_space<vmem>>, %arg4: memref<1x8x128xf32, #tpu.memory_space<vmem>>, %arg5: memref<1x8x128xf32, #tpu.memory_space<vmem>>) attributes {dimension_semantics = [#tpu.dimension_semantics<parallel>, #tpu.dimension_semantics<arbitrary>], iteration_bounds = array<i64: 1, 1>, scalar_prefetch = 0 : i64, scratch_operands = 0 : i64, tpu.core_type = #tpu.core_type<tc>, window_params = [{transform_indices = @transform_0, window_bounds = array<i64: 16, 128>}, {transform_indices = @transform_1, window_bounds = array<i64: 16, 128>}, {transform_indices = @transform_2, window_bounds = array<i64: 1, 8, 128>}, {transform_indices = @transform_3, window_bounds = array<i64: 1, 8, 128>}]} {
    %c0_i32 = arith.constant 0 : i32
    %0 = arith.cmpi eq, %arg1, %c0_i32 : i32
    %1 = arith.extui %0 : i1 to i32
    %c0_i32_0 = arith.constant 0 : i32
    %2 = arith.cmpi ne, %1, %c0_i32_0 : i32
    scf.if %2 {
      %cst_17 = arith.constant 0.000000e+00 : f32
      %23 = vector.broadcast %cst_17 : f32 to vector<8x128xf32>
      %c0_18 = arith.constant 0 : index
      %c0_19 = arith.constant 0 : index
      %c0_20 = arith.constant 0 : index
      %24 = vector.load %arg4[%c0_18, %c0_19, %c0_20] : memref<1x8x128xf32, #tpu.memory_space<vmem>>, vector<1x8x128xf32>
      %25 = vector.shape_cast %24 : vector<1x8x128xf32> to vector<8x128xf32>
      %26 = vector.shape_cast %23 : vector<8x128xf32> to vector<1x8x128xf32>
      tpu.vector_store %arg4[%c0_18, %c0_19, %c0_20], %26 {strides = array<i32>} : memref<1x8x128xf32, #tpu.memory_space<vmem>>, vector<1x8x128xf32>,
      %cst_21 = arith.constant 0.000000e+00 : f32
      %27 = vector.broadcast %cst_21 : f32 to vector<8x128xf32>
      %c0_22 = arith.constant 0 : index
      %c0_23 = arith.constant 0 : index
      %c0_24 = arith.constant 0 : index
      %28 = vector.load %arg5[%c0_22, %c0_23, %c0_24] : memref<1x8x128xf32, #tpu.memory_space<vmem>>, vector<1x8x128xf32>
      %29 = vector.shape_cast %28 : vector<1x8x128xf32> to vector<8x128xf32>
      %30 = vector.shape_cast %27 : vector<8x128xf32> to vector<1x8x128xf32>
      tpu.vector_store %arg5[%c0_22, %c0_23, %c0_24], %30 {strides = array<i32>} : memref<1x8x128xf32, #tpu.memory_space<vmem>>, vector<1x8x128xf32>,
    } else {
    }
    %c0 = arith.constant 0 : index
    %c0_1 = arith.constant 0 : index
    %3 = vector.load %arg2[%c0, %c0_1] : memref<16x128xf32, #tpu.memory_space<vmem>>, vector<16x128xf32>
    %c0_2 = arith.constant 0 : index
    %c0_3 = arith.constant 0 : index
    %4 = vector.load %arg3[%c0_2, %c0_3] : memref<16x128xf32, #tpu.memory_space<vmem>>, vector<16x128xf32>
    %5 = arith.subf %3, %4 : vector<16x128xf32>
    %6 = vector.shape_cast %5 : vector<16x128xf32> to vector<2x8x128xf32>
    %c0_4 = arith.constant 0 : index
    %c0_5 = arith.constant 0 : index
    %c0_6 = arith.constant 0 : index
    %7 = vector.load %arg4[%c0_4, %c0_5, %c0_6] : memref<1x8x128xf32, #tpu.memory_space<vmem>>, vector<1x8x128xf32>
    %8 = vector.shape_cast %7 : vector<1x8x128xf32> to vector<8x128xf32>
    %9 = math.absf %6 : vector<2x8x128xf32>
    %cst = arith.constant dense<0.000000e+00> : vector<8x128xf32>
    %10 = vector.multi_reduction <add>, %9, %cst [0] : vector<2x8x128xf32> to vector<8x128xf32>
    %11 = arith.addf %8, %10 : vector<8x128xf32>
    %c0_7 = arith.constant 0 : index
    %c0_8 = arith.constant 0 : index
    %c0_9 = arith.constant 0 : index
    %12 = vector.load %arg4[%c0_7, %c0_8, %c0_9] : memref<1x8x128xf32, #tpu.memory_space<vmem>>, vector<1x8x128xf32>
    %13 = vector.shape_cast %12 : vector<1x8x128xf32> to vector<8x128xf32>
    %14 = vector.shape_cast %11 : vector<8x128xf32> to vector<1x8x128xf32>
    tpu.vector_store %arg4[%c0_7, %c0_8, %c0_9], %14 {strides = array<i32>} : memref<1x8x128xf32, #tpu.memory_space<vmem>>, vector<1x8x128xf32>,
    %c0_10 = arith.constant 0 : index
    %c0_11 = arith.constant 0 : index
    %c0_12 = arith.constant 0 : index
    %15 = vector.load %arg5[%c0_10, %c0_11, %c0_12] : memref<1x8x128xf32, #tpu.memory_space<vmem>>, vector<1x8x128xf32>
    %16 = vector.shape_cast %15 : vector<1x8x128xf32> to vector<8x128xf32>
    %17 = arith.mulf %6, %6 : vector<2x8x128xf32>
    %cst_13 = arith.constant dense<0.000000e+00> : vector<8x128xf32>
    %18 = vector.multi_reduction <add>, %17, %cst_13 [0] : vector<2x8x128xf32> to vector<8x128xf32>
    %19 = arith.addf %16, %18 : vector<8x128xf32>
    %c0_14 = arith.constant 0 : index
    %c0_15 = arith.constant 0 : index
    %c0_16 = arith.constant 0 : index
    %20 = vector.load %arg5[%c0_14, %c0_15, %c0_16] : memref<1x8x128xf32, #tpu.memory_space<vmem>>, vector<1x8x128xf32>
    %21 = vector.shape_cast %20 : vector<1x8x128xf32> to vector<8x128xf32>
    %22 = vector.shape_cast %19 : vector<8x128xf32> to vector<1x8x128xf32>
    tpu.vector_store %arg5[%c0_14, %c0_15, %c0_16], %22 {strides = array<i32>} : memref<1x8x128xf32, #tpu.memory_space<vmem>>, vector<1x8x128xf32>,
    return
  }
  func.func @transform_0(%arg0: i32, %arg1: i32) -> (i32, i32) {
    %c1_i32 = arith.constant 1 : i32
    %0 = arith.muli %arg0, %c1_i32 : i32
    %1 = arith.addi %0, %arg1 : i32
    %c0_i32 = arith.constant 0 : i32
    %c0_i32_0 = arith.constant 0 : i32
    return %1, %c0_i32 : i32, i32
  }
  func.func @transform_1(%arg0: i32, %arg1: i32) -> (i32, i32) {
    %c1_i32 = arith.constant 1 : i32
    %0 = arith.muli %arg0, %c1_i32 : i32
    %1 = arith.addi %0, %arg1 : i32
    %c0_i32 = arith.constant 0 : i32
    %c0_i32_0 = arith.constant 0 : i32
    return %1, %c0_i32 : i32, i32
  }
  func.func @transform_2(%arg0: i32, %arg1: i32) -> (i32, i32, i32) {
    %c0_i32 = arith.constant 0 : i32
    %c0_i32_0 = arith.constant 0 : i32
    %c0_i32_1 = arith.constant 0 : i32
    return %arg0, %c0_i32, %c0_i32_0 : i32, i32, i32
  }
  func.func @transform_3(%arg0: i32, %arg1: i32) -> (i32, i32, i32) {
    %c0_i32 = arith.constant 0 : i32
    %c0_i32_0 = arith.constant 0 : i32
    %c0_i32_1 = arith.constant 0 : i32
    return %arg0, %c0_i32, %c0_i32_0 : i32, i32, i32
  }
}

</mosaic_0001>

<llo_original>
// kernel: tpu_custom_call.1
$region0: #{tpu_custom_call.1}
  #allocation0 [shape = 'u32[]', space=smem, size = 0x4, offset = 0x4, fixed_abs, tag = 'smem constant byte address 0x4 - core index']
  #allocation1 [shape = 'u32[72,128]{1,0:T(1,128)}', space=vmem, size = 0x9000, scoped, tag = 'internal scratch']
  %s0 = inlined_call_operand.hbm [shape: f32[16,128], index: 0, kind: input, shape index: {}]
  %s1 = inlined_call_operand.hbm [shape: f32[16,128], index: 1, kind: input, shape index: {}]
  %s2 = inlined_call_operand.hbm [shape: f32[1,8,128], index: 2, kind: output, shape index: {0}]
  %s3 = inlined_call_operand.hbm [shape: f32[1,8,128], index: 3, kind: output, shape index: {1}]
  %4 = xla_tuple %s2, %s3
  %s5 = sld [smem:[#allocation0]]
  $region38: #{tpu_custom_call.1} parent=0
    _
  %s7 = ssub.s32 1, %s5
  %s8 = scalar_select 0, %s7, %s5
  $region1: #{tpu_custom_call.1} parent=0
    #allocation2 [shape = 'u8[8192]{0}', space=vmem, size = 0x2000, scoped, tag = 'input window, operand 0, single buffered']
    #allocation3 [shape = 's32[1]{0}', space=sflag, size = 0x4, scoped, tag = 'scoped memory for tpu_custom_call.1']
    #allocation4 [shape = 's32[1]{0}', space=sflag, size = 0x4, scoped, tag = 'scoped memory for tpu_custom_call.1']
    #allocation5 [shape = 'u8[8192]{0}', space=vmem, size = 0x2000, scoped, tag = 'input window, operand 1, single buffered']
    #allocation6 [shape = 's32[1]{0}', space=sflag, size = 0x4, scoped, tag = 'scoped memory for tpu_custom_call.1']
    #allocation7 [shape = 'u8[4096]{0}', space=vmem, size = 0x1000, scoped, tag = 'output window, operand 0, single buffered']
    #allocation8 [shape = 'u8[4096]{0}', space=vmem, size = 0x1000, scoped, tag = 'output window, operand 1, single buffered']
    #allocation9 [shape = 's32[1]{0}', space=sflag, size = 0x4, scoped, tag = 'scoped memory for tpu_custom_call.1']
    %9 = vsyncpa [#allocation3], 0
    %10 = vsyncpa [#allocation6], 0
    %11 = vsyncpa [#allocation4], 0
    %12 = vsyncpa [#allocation9], 0
    // Predicated region
    $region2: #{tpu_custom_call.1} parent=1 // pred_check
      _
    $region3: #{tpu_custom_call.1} parent=1 // pred_check_branch
      %14 = sbr.rel (0) target = $region5
    $region4: #{tpu_custom_call.1} parent=1 // pred_region
      %s15 = sadd.s32 0, 0
      %s16 = smul.u32 2, %s15
      %18 = vsyncadd [#allocation3], 0
      %s19 = smul.addr %s16, 8
      %s20 = scalar_lea.hbm %s0, %s19
      %s21 = sshll.u32 %s20, 4
      %s22 = int_to_ptr.hbm [resolvable:$true] %s21
      %s23 = sshll.u32 [#allocation2], 4
      %s24 = int_to_ptr.vmem [resolvable:$true] %s23
      %29 = dma.hbm_to_vmem [thread:$0]  %s22, 256, %s24, [#allocation3], 128, 128, 8
    $region5: #{tpu_custom_call.1} parent=1 // pred_fallthru
      _
    // Predicated region
    $region6: #{tpu_custom_call.1} parent=1 // pred_check
      _
    $region7: #{tpu_custom_call.1} parent=1 // pred_check_branch
      %31 = sbr.rel (0) target = $region9
    $region8: #{tpu_custom_call.1} parent=1 // pred_region
      %s32 = sadd.s32 0, 0
      %s33 = smul.u32 2, %s32
      %35 = vsyncadd [#allocation6], 0
      %s36 = smul.addr %s33, 8
      %s37 = scalar_lea.hbm %s1, %s36
      %s38 = sshll.u32 %s37, 4
      %s39 = int_to_ptr.hbm [resolvable:$true] %s38
      %s40 = sshll.u32 [#allocation5], 4
      %s41 = int_to_ptr.vmem [resolvable:$true] %s40
      %46 = dma.hbm_to_vmem [thread:$0]  %s39, 256, %s41, [#allocation6], 128, 128, 8
    $region9: #{tpu_custom_call.1} parent=1 // pred_fallthru
      _
    // Predicated region
    $region10: #{tpu_custom_call.1} parent=1 // pred_check
      _
    $region11: #{tpu_custom_call.1} parent=1 // pred_check_branch
      %48 = sbr.rel (0) target = $region13
    $region12: #{tpu_custom_call.1} parent=1 // pred_region
      %50 = dma.done [#allocation3], 256
    $region13: #{tpu_custom_call.1} parent=1 // pred_fallthru
      _
    // Predicated region
    $region14: #{tpu_custom_call.1} parent=1 // pred_check
      _
    $region15: #{tpu_custom_call.1} parent=1 // pred_check_branch
      %52 = sbr.rel (0) target = $region17
    $region16: #{tpu_custom_call.1} parent=1 // pred_region
      %54 = dma.done [#allocation6], 256
    $region17: #{tpu_custom_call.1} parent=1 // pred_fallthru
      _
    %s55 = sadd.s32 0, 0
    %s56 = smul.u32 2, %s55
    %s57 = sadd.s32 0, 0
    %s58 = smul.u32 2, %s57
    %p59 = scmp.eq.s32.totalorder 0, 0
    // Predicated region
    $region18: #{tpu_custom_call.1} parent=1 // pred_check
      %p60 = pneg %p59
    $region19: #{tpu_custom_call.1} parent=1 // pred_check_branch
      %62 = sbr.rel (%p60) target = $region21
    $region20: #{tpu_custom_call.1} parent=1 // pred_region
      %63 = vst [vmem:[#allocation7] sm:$0xff] 0.0
      %64 = vst [vmem:[#allocation8] sm:$0xff] 0.0
    $region21: #{tpu_custom_call.1} parent=1 // pred_fallthru
      _
    %v65 = vld [vmem:[#allocation2] sm:$0xff]
    %v66 = vld [vmem:[#allocation2 + $0x8] sm:$0xff]
    %v67 = vld [vmem:[#allocation5] sm:$0xff]
    %v68 = vld [vmem:[#allocation5 + $0x8] sm:$0xff]
    %v69 = vsub.f32 %v65, %v67
    %v70 = vsub.f32 %v66, %v68
    %v71 = vld [vmem:[#allocation7] sm:$0xff]
    %v72 = vand.u32 2147483647, %v69
    %v73 = vand.u32 2147483647, %v70
    %v74 = vadd.f32 %v72, %v73
    %v75 = vadd.f32 %v71, %v74
    %76 = vst [vmem:[#allocation7] sm:$0xff] %v75
    %v77 = vld [vmem:[#allocation8] sm:$0xff]
    %v78 = vmul.f32 %v69, %v69
    %v79 = vmul.f32 %v70, %v70
    %v80 = vadd.f32 %v78, %v79
    %v81 = vadd.f32 %v77, %v80
    %82 = vst [vmem:[#allocation8] sm:$0xff] %v81
    // Predicated region
    $region22: #{tpu_custom_call.1} parent=1 // pred_check
      _
    $region23: #{tpu_custom_call.1} parent=1 // pred_check_branch
      %84 = sbr.rel (0) target = $region25
    $region24: #{tpu_custom_call.1} parent=1 // pred_region
      %86 = vsyncadd [#allocation4], 0
      %s88 = sshll.u32 [#allocation7], 4
      %s89 = int_to_ptr.vmem [resolvable:$true] %s88
      %s90 = sshll.u32 %s2, 4
      %s91 = int_to_ptr.hbm [resolvable:$true] %s90
      %93 = dma.vmem_to_hbm [thread:$0]  %s89, 128, %s91, [#allocation4]
    $region25: #{tpu_custom_call.1} parent=1 // pred_fallthru
      _
    // Predicated region
    $region26: #{tpu_custom_call.1} parent=1 // pred_check
      _
    $region27: #{tpu_custom_call.1} parent=1 // pred_check_branch
      %95 = sbr.rel (0) target = $region29
    $region28: #{tpu_custom_call.1} parent=1 // pred_region
      %97 = vsyncadd [#allocation9], 0
      %s99 = sshll.u32 [#allocation8], 4
      %s100 = int_to_ptr.vmem [resolvable:$true] %s99
      %s101 = sshll.u32 %s3, 4
      %s102 = int_to_ptr.hbm [resolvable:$true] %s101
      %104 = dma.vmem_to_hbm [thread:$0]  %s100, 128, %s102, [#allocation9]
    $region29: #{tpu_custom_call.1} parent=1 // pred_fallthru
      _
    // Predicated region
    $region30: #{tpu_custom_call.1} parent=1 // pred_check
      _
    $region31: #{tpu_custom_call.1} parent=1 // pred_check_branch
      %106 = sbr.rel (0) target = $region33
    $region32: #{tpu_custom_call.1} parent=1 // pred_region
      %108 = dma.done [#allocation4], 128
    $region33: #{tpu_custom_call.1} parent=1 // pred_fallthru
      _
    // Predicated region
    $region34: #{tpu_custom_call.1} parent=1 // pred_check
      _
    $region35: #{tpu_custom_call.1} parent=1 // pred_check_branch
      %110 = sbr.rel (0) target = $region37
    $region36: #{tpu_custom_call.1} parent=1 // pred_region
      %112 = dma.done [#allocation9], 128
    $region37: #{tpu_custom_call.1} parent=1 // pred_fallthru
      _
    %113 = vsyncpa [#allocation3], 1
    %114 = vsyncpa [#allocation6], 1
    %115 = vsyncpa [#allocation4], 1
    %116 = vsyncpa [#allocation9], 1

</llo_original>
